<compile_context>
chip_gen: v6e
topology: v6e:2x2x1
jax: 0.10.0
libtpu: 0.0.40
codegen_flags: <defaults>
</compile_context>

<pallas_src>
import functools
import math

import jax
import jax.numpy as jnp
from jax.experimental import pallas as pl
from jax.experimental.pallas import tpu as pltpu


_LANE = 128                      # lane width of the flattened slab
_SUBLANE_F32 = 8                 # f32 sublane granularity
_TARGET_TILE_BYTES = 512 * 1024  # ~512 KiB per input per pipeline buffer
_PREFERRED_TILE_ROWS = 512       # ~85% of HBM roofline at this tile height (f32)
_MIN_EXACT_TILE_ROWS = 256       # accept an exact (no-pad) tiling down to this height
_MIN_PIPELINE_STEPS = 4
_VMEM_LIMIT_BYTES = 32 * 1024 * 1024


def _round_up(x, m):
    return ((x + m - 1) // m) * m


def _sublane_pack(dtype):
    """Sublane packing for a dtype: f32 -> 8 rows, bf16 -> 16, int8/fp8 -> 32."""
    itemsize = jnp.dtype(dtype).itemsize
    return _SUBLANE_F32 * max(1, 4 // max(1, itemsize))


def _device_kind():
    try:
        return jax.devices()[0].device_kind.lower()
    except Exception:
        return ""


def _choose_tiling(rows, splits, pack, itemsize):
    """Return (tile_rows, tiles_per_split, rows_padded)."""
    target_rows = max(pack, (_TARGET_TILE_BYTES // (itemsize * _LANE)) // pack * pack)

    # Preferred: an exact tiling (zero padding -> zero extra HBM copy in the wrapper).
    if rows > 0 and rows % (splits * pack) == 0:
        q = rows // (splits * pack)                       # sublane-packs per split
        cands = set()
        for d in range(1, math.isqrt(q) + 1):
            if q % d == 0:
                cands.add(d)
                cands.add(q // d)
        feasible = [c for c in cands if c * pack <= target_rows]
        if feasible:
            pipelined = [c for c in feasible
                         if q // c >= _MIN_PIPELINE_STEPS
                         and c * pack >= _PREFERRED_TILE_ROWS]
            best = max(pipelined) if pipelined else max(feasible)
            if best * pack >= _MIN_EXACT_TILE_ROWS or best == q:
                return best * pack, q // best, rows

    # Fallback: pad (explicit zeros, which add exactly 0 to the loss) to exact coverage.
    rows_per_split = pl.cdiv(rows, splits)
    tiles_per_split = max(1, pl.cdiv(rows_per_split, target_rows))
    if rows_per_split >= _MIN_PIPELINE_STEPS * _PREFERRED_TILE_ROWS:
        tiles_per_split = max(tiles_per_split, _MIN_PIPELINE_STEPS)
    tile_rows = _round_up(pl.cdiv(rows_per_split, tiles_per_split), pack)
    rows_padded = splits * tiles_per_split * tile_rows
    return tile_rows, tiles_per_split, rows_padded


def _capsule_loss_kernel(labels_ref, classes_ref, images_ref, recon_ref,
                         out_ref, acc_ref, margin_ref, *, batch):
    c = pl.program_id(0)   # split (per-TensorCore partial on 2-TC chips)
    i = pl.program_id(1)   # pipeline step over the flattened slab

    @pl.when(i == 0)
    def _init():
        acc_ref[...] = jnp.zeros_like(acc_ref)
        margin_ref[0] = jnp.float32(0.0)

    @pl.when((i == 0) & (c == 0))
    def _margin():
        # Margin loss: sum( y * relu(0.9 - c)^2 + 0.5 * (1 - y) * relu(c - 0.1)^2 )
        classes = classes_ref[...].astype(jnp.float32)
        labels = labels_ref[...].astype(jnp.float32)
        left = jnp.maximum(0.9 - classes, 0.0) ** 2
        right = jnp.maximum(classes - 0.1, 0.0) ** 2
        margin_ref[0] = jnp.sum(labels * left + 0.5 * (1.0 - labels) * right)

    # Steady state: elementwise squared diff folded into a single (8, 128) vreg
    # accumulator (pure VPU vreg adds; cross-lane reduce deferred to the epilogue).
    diff = recon_ref[...].astype(jnp.float32) - images_ref[...].astype(jnp.float32)
    sq = diff * diff
    acc_ref[...] += jnp.sum(sq.reshape(-1, _SUBLANE_F32, _LANE), axis=0)

    @pl.when(i == pl.num_programs(1) - 1)
    def _finalize():
        recon_loss = jnp.sum(acc_ref[...])
        out_ref[0, 0] = (margin_ref[0] + 0.0005 * recon_loss) / jnp.float32(batch)


def _data_block_spec(tile_rows, index_map, buffers):
    # 3-deep buffering only where requested (v7x, enough steps); fall back cleanly
    # if this JAX version's BlockSpec has no pipeline_mode kwarg.
    if buffers > 2 and hasattr(pl, "Buffered"):
        try:
            return pl.BlockSpec((tile_rows, _LANE), index_map,
                                pipeline_mode=pl.Buffered(buffers))
        except TypeError:
            pass
    return pl.BlockSpec((tile_rows, _LANE), index_map)


def capsule_loss(images, labels, classes, reconstructions):
    """JAX/Pallas equivalent of CapsuleLoss.forward.

    images:          (B, C, H, W) float
    labels:          (B, NUM_CLASSES) float (one-hot)
    classes:         (B, NUM_CLASSES) float (capsule lengths)
    reconstructions: (B, C*H*W) float
    returns scalar float32 loss.
    """
    b = reconstructions.shape[0]
    n = images.size
    assert n == reconstructions.size

    img_itemsize = jnp.dtype(images.dtype).itemsize
    rec_itemsize = jnp.dtype(reconstructions.dtype).itemsize
    pack = max(_sublane_pack(images.dtype), _sublane_pack(reconstructions.dtype))

    kind = _device_kind()
    is_v7x = "v7" in kind
    splits = 2 if is_v7x else 1          # 2 TensorCores only on v7x; serial elsewhere

    rows = pl.cdiv(n, _LANE)
    tile_rows, tiles_per_split, rows_padded = _choose_tiling(
        rows, splits, pack, max(img_itemsize, rec_itemsize))
    n_padded = rows_padded * _LANE

    def to_slab(x):
        flat = x.reshape(-1)
        if n_padded != n:
            # Only taken when no exact tiling exists; zero padding adds exactly 0
            # to sum((recon - images)^2).
            flat = jnp.pad(flat, (0, n_padded - n))
        return flat.reshape(rows_padded, _LANE)

    images_slab = to_slab(images)
    recon_slab = to_slab(reconstructions)

    data_index_map = lambda c, i: (c * tiles_per_split + i, 0)
    const_index_map = lambda c, i: (0, 0)   # labels/classes stay resident, never re-DMA'd
    buffers = 3 if (is_v7x and tiles_per_split >= 3) else 2

    cost = pl.CostEstimate(
        flops=3 * n_padded + 6 * labels.size,
        transcendentals=0,
        bytes_accessed=n_padded * (img_itemsize + rec_itemsize)
        + labels.nbytes + classes.nbytes + splits * 4,
    )

    partials = pl.pallas_call(
        functools.partial(_capsule_loss_kernel, batch=b),
        out_shape=jax.ShapeDtypeStruct((splits, 1), jnp.float32),
        grid=(splits, tiles_per_split),
        in_specs=[
            pl.BlockSpec(labels.shape, const_index_map),            # labels  (full block)
            pl.BlockSpec(classes.shape, const_index_map),           # classes (full block)
            _data_block_spec(tile_rows, data_index_map, buffers),   # images slab tile
            _data_block_spec(tile_rows, data_index_map, buffers),   # reconstructions tile
        ],
        out_specs=pl.BlockSpec((1, 1), lambda c, i: (c, 0),
                               memory_space=pltpu.SMEM),
        scratch_shapes=[
            pltpu.VMEM((_SUBLANE_F32, _LANE), jnp.float32),         # single-vreg accumulator
            pltpu.SMEM((1,), jnp.float32),                          # margin-loss scalar
        ],
        compiler_params=pltpu.CompilerParams(
            dimension_semantics=("parallel", "arbitrary"),
            vmem_limit_bytes=_VMEM_LIMIT_BYTES,
        ),
        cost_estimate=cost,
    )(labels, classes, images_slab, recon_slab)

    # Sum the per-split partials (already scaled and divided by batch in-kernel).
    return jnp.sum(partials)


if __name__ == "__main__":
    key = jax.random.PRNGKey(0)
    k1, k2, k3, k4 = jax.random.split(key, 4)

    B, C, H, W = 2, 4, 16, 16
    NUM_CLASSES = 10
    D = C * H * W

    images = jax.random.uniform(k1, (B, C, H, W), dtype=jnp.float32)
    label_idx = jax.random.randint(k2, (B,), 0, NUM_CLASSES)
    labels = jax.nn.one_hot(label_idx, NUM_CLASSES, dtype=jnp.float32)
    classes = jax.random.uniform(k3, (B, NUM_CLASSES), dtype=jnp.float32)
    reconstructions = jax.random.uniform(k4, (B, D), dtype=jnp.float32)

    loss = capsule_loss(images, labels, classes, reconstructions)
    jax.block_until_ready(loss)

    # Plain-JAX reference sanity check.
    left = jnp.maximum(0.9 - classes, 0.0) ** 2
    right = jnp.maximum(classes - 0.1, 0.0) ** 2
    margin = jnp.sum(labels * left + 0.5 * (1.0 - labels) * right)
    recon = jnp.sum((reconstructions - images.reshape(B, -1)) ** 2)
    ref = (margin + 0.0005 * recon) / B
    assert jnp.allclose(loss, ref, rtol=1e-5, atol=1e-5), (loss, ref)

    print("KERNEL_OK")
</pallas_src>

<mosaic_0001>
module attributes {stable_mosaic.version = 11 : i64} {
  func.func @_capsule_loss_kernel(%arg0: i32, %arg1: i32, %arg2: memref<2x10xf32, #tpu.memory_space<vmem>>, %arg3: memref<2x10xf32, #tpu.memory_space<vmem>>, %arg4: memref<16x128xf32, #tpu.memory_space<vmem>>, %arg5: memref<16x128xf32, #tpu.memory_space<vmem>>, %arg6: memref<1x1xf32, #tpu.memory_space<smem>>, %arg7: memref<8x128xf32, #tpu.memory_space<vmem>>, %arg8: memref<1xf32, #tpu.memory_space<smem>>) attributes {dimension_semantics = [#tpu.dimension_semantics<parallel>, #tpu.dimension_semantics<arbitrary>], iteration_bounds = array<i64: 1, 1>, scalar_prefetch = 0 : i64, scratch_operands = 2 : i64, tpu.core_type = #tpu.core_type<tc>, window_params = [{pipeline_mode = #tpu.pipeline_mode<synchronous>, transform_indices = @transform_0, window_bounds = array<i64: 2, 10>}, {pipeline_mode = #tpu.pipeline_mode<synchronous>, transform_indices = @transform_1, window_bounds = array<i64: 2, 10>}, {transform_indices = @transform_2, window_bounds = array<i64: 16, 128>}, {transform_indices = @transform_3, window_bounds = array<i64: 16, 128>}, {transform_indices = @transform_4, window_bounds = array<i64: 1, 1>}]} {
    %c0_i32 = arith.constant 0 : i32
    %0 = arith.cmpi eq, %arg1, %c0_i32 : i32
    %1 = arith.extui %0 : i1 to i32
    %c0_i32_0 = arith.constant 0 : i32
    %2 = arith.cmpi ne, %1, %c0_i32_0 : i32
    scf.if %2 {
      %cst_13 = arith.constant 0.000000e+00 : f32
      %20 = vector.broadcast %cst_13 : f32 to vector<8x128xf32>
      %c0_14 = arith.constant 0 : index
      %c0_15 = arith.constant 0 : index
      %21 = vector.load %arg7[%c0_14, %c0_15] : memref<8x128xf32, #tpu.memory_space<vmem>>, vector<8x128xf32>
      tpu.vector_store %arg7[%c0_14, %c0_15], %20 {strides = array<i32>} : memref<8x128xf32, #tpu.memory_space<vmem>>, vector<8x128xf32>,
      %cst_16 = arith.constant 0.000000e+00 : f32
      %c0_17 = arith.constant 0 : index
      %22 = memref.load %arg8[%c0_17] : memref<1xf32, #tpu.memory_space<smem>>
      memref.store %cst_16, %arg8[%c0_17] : memref<1xf32, #tpu.memory_space<smem>>
    } else {
    }
    %c0_i32_1 = arith.constant 0 : i32
    %3 = arith.cmpi eq, %arg1, %c0_i32_1 : i32
    %c0_i32_2 = arith.constant 0 : i32
    %4 = arith.cmpi eq, %arg0, %c0_i32_2 : i32
    %5 = arith.andi %3, %4 : i1
    %6 = arith.extui %5 : i1 to i32
    %c0_i32_3 = arith.constant 0 : i32
    %7 = arith.cmpi ne, %6, %c0_i32_3 : i32
    scf.if %7 {
      %c0_13 = arith.constant 0 : index
      %c0_14 = arith.constant 0 : index
      %20 = vector.load %arg3[%c0_13, %c0_14] : memref<2x10xf32, #tpu.memory_space<vmem>>, vector<2x10xf32>
      %c0_15 = arith.constant 0 : index
      %c0_16 = arith.constant 0 : index
      %21 = vector.load %arg2[%c0_15, %c0_16] : memref<2x10xf32, #tpu.memory_space<vmem>>, vector<2x10xf32>
      %cst_17 = arith.constant 0.899999976 : f32
      %22 = vector.broadcast %cst_17 : f32 to vector<2x10xf32>
      %23 = arith.subf %22, %20 : vector<2x10xf32>
      %cst_18 = arith.constant 0.000000e+00 : f32
      %24 = vector.broadcast %cst_18 : f32 to vector<2x10xf32>
      %25 = arith.maximumf %23, %24 : vector<2x10xf32>
      %26 = arith.mulf %25, %25 : vector<2x10xf32>
      %cst_19 = arith.constant 1.000000e-01 : f32
      %27 = vector.broadcast %cst_19 : f32 to vector<2x10xf32>
      %28 = arith.subf %20, %27 : vector<2x10xf32>
      %cst_20 = arith.constant 0.000000e+00 : f32
      %29 = vector.broadcast %cst_20 : f32 to vector<2x10xf32>
      %30 = arith.maximumf %28, %29 : vector<2x10xf32>
      %31 = arith.mulf %30, %30 : vector<2x10xf32>
      %32 = arith.mulf %21, %26 : vector<2x10xf32>
      %cst_21 = arith.constant 1.000000e+00 : f32
      %33 = vector.broadcast %cst_21 : f32 to vector<2x10xf32>
      %34 = arith.subf %33, %21 : vector<2x10xf32>
      %cst_22 = arith.constant 5.000000e-01 : f32
      %35 = vector.broadcast %cst_22 : f32 to vector<2x10xf32>
      %36 = arith.mulf %35, %34 : vector<2x10xf32>
      %37 = arith.mulf %36, %31 : vector<2x10xf32>
      %38 = arith.addf %32, %37 : vector<2x10xf32>
      %39 = vector.shape_cast %38 : vector<2x10xf32> to vector<1x2x10xf32>
      %cst_23 = arith.constant dense<0.000000e+00> : vector<1xf32>
      %40 = vector.multi_reduction <add>, %39, %cst_23 [1, 2] : vector<1x2x10xf32> to vector<1xf32>
      %41 = vector.shape_cast %40 : vector<1xf32> to vector<1x1x1xf32>
      %42 = vector.extract %41[0, 0, 0] : f32 from vector<1x1x1xf32>
      %c0_24 = arith.constant 0 : index
      %43 = memref.load %arg8[%c0_24] : memref<1xf32, #tpu.memory_space<smem>>
      memref.store %42, %arg8[%c0_24] : memref<1xf32, #tpu.memory_space<smem>>
    } else {
    }
    %c0 = arith.constant 0 : index
    %c0_4 = arith.constant 0 : index
    %8 = vector.load %arg5[%c0, %c0_4] : memref<16x128xf32, #tpu.memory_space<vmem>>, vector<16x128xf32>
    %c0_5 = arith.constant 0 : index
    %c0_6 = arith.constant 0 : index
    %9 = vector.load %arg4[%c0_5, %c0_6] : memref<16x128xf32, #tpu.memory_space<vmem>>, vector<16x128xf32>
    %10 = arith.subf %8, %9 : vector<16x128xf32>
    %11 = arith.mulf %10, %10 : vector<16x128xf32>
    %c0_7 = arith.constant 0 : index
    %c0_8 = arith.constant 0 : index
    %12 = vector.load %arg7[%c0_7, %c0_8] : memref<8x128xf32, #tpu.memory_space<vmem>>, vector<8x128xf32>
    %13 = vector.shape_cast %11 : vector<16x128xf32> to vector<2x8x128xf32>
    %cst = arith.constant dense<0.000000e+00> : vector<8x128xf32>
    %14 = vector.multi_reduction <add>, %13, %cst [0] : vector<2x8x128xf32> to vector<8x128xf32>
    %15 = arith.addf %12, %14 : vector<8x128xf32>
    %c0_9 = arith.constant 0 : index
    %c0_10 = arith.constant 0 : index
    %16 = vector.load %arg7[%c0_9, %c0_10] : memref<8x128xf32, #tpu.memory_space<vmem>>, vector<8x128xf32>
    tpu.vector_store %arg7[%c0_9, %c0_10], %15 {strides = array<i32>} : memref<8x128xf32, #tpu.memory_space<vmem>>, vector<8x128xf32>,
    %c0_i32_11 = arith.constant 0 : i32
    %17 = arith.cmpi eq, %arg1, %c0_i32_11 : i32
    %18 = arith.extui %17 : i1 to i32
    %c0_i32_12 = arith.constant 0 : i32
    %19 = arith.cmpi ne, %18, %c0_i32_12 : i32
    scf.if %19 {
      %c0_13 = arith.constant 0 : index
      %c0_14 = arith.constant 0 : index
      %20 = vector.load %arg7[%c0_13, %c0_14] : memref<8x128xf32, #tpu.memory_space<vmem>>, vector<8x128xf32>
      %21 = vector.shape_cast %20 : vector<8x128xf32> to vector<1x8x128xf32>
      %cst_15 = arith.constant dense<0.000000e+00> : vector<1xf32>
      %22 = vector.multi_reduction <add>, %21, %cst_15 [1, 2] : vector<1x8x128xf32> to vector<1xf32>
      %23 = vector.shape_cast %22 : vector<1xf32> to vector<1x1x1xf32>
      %24 = vector.extract %23[0, 0, 0] : f32 from vector<1x1x1xf32>
      %c0_16 = arith.constant 0 : index
      %25 = memref.load %arg8[%c0_16] : memref<1xf32, #tpu.memory_space<smem>>
      %cst_17 = arith.constant 5.000000e-04 : f32
      %26 = arith.mulf %cst_17, %24 : f32
      %27 = arith.addf %25, %26 : f32
      %cst_18 = arith.constant 2.000000e+00 : f32
      %28 = arith.divf %27, %cst_18 : f32
      %c0_19 = arith.constant 0 : index
      %c0_20 = arith.constant 0 : index
      %29 = memref.load %arg6[%c0_19, %c0_20] : memref<1x1xf32, #tpu.memory_space<smem>>
      memref.store %28, %arg6[%c0_19, %c0_20] : memref<1x1xf32, #tpu.memory_space<smem>>
    } else {
    }
    return
  }
  func.func @transform_0(%arg0: i32, %arg1: i32) -> (i32, i32) {
    %c0_i32 = arith.constant 0 : i32
    %c0_i32_0 = arith.constant 0 : i32
    %c0_i32_1 = arith.constant 0 : i32
    return %c0_i32, %c0_i32_0 : i32, i32
  }
  func.func @transform_1(%arg0: i32, %arg1: i32) -> (i32, i32) {
    %c0_i32 = arith.constant 0 : i32
    %c0_i32_0 = arith.constant 0 : i32
    %c0_i32_1 = arith.constant 0 : i32
    return %c0_i32, %c0_i32_0 : i32, i32
  }
  func.func @transform_2(%arg0: i32, %arg1: i32) -> (i32, i32) {
    %c1_i32 = arith.constant 1 : i32
    %0 = arith.muli %arg0, %c1_i32 : i32
    %1 = arith.addi %0, %arg1 : i32
    %c0_i32 = arith.constant 0 : i32
    %c0_i32_0 = arith.constant 0 : i32
    return %1, %c0_i32 : i32, i32
  }
  func.func @transform_3(%arg0: i32, %arg1: i32) -> (i32, i32) {
    %c1_i32 = arith.constant 1 : i32
    %0 = arith.muli %arg0, %c1_i32 : i32
    %1 = arith.addi %0, %arg1 : i32
    %c0_i32 = arith.constant 0 : i32
    %c0_i32_0 = arith.constant 0 : i32
    return %1, %c0_i32 : i32, i32
  }
  func.func @transform_4(%arg0: i32, %arg1: i32) -> (i32, i32) {
    %c0_i32 = arith.constant 0 : i32
    %c0_i32_0 = arith.constant 0 : i32
    return %arg0, %c0_i32 : i32, i32
  }
}

</mosaic_0001>

<llo_original>
// kernel: tpu_custom_call.1
$region0: #{tpu_custom_call.1}
  #allocation0 [shape = 'u32[]', space=smem, size = 0x4, offset = 0x4, fixed_abs, tag = 'smem constant byte address 0x4 - core index']
  #allocation1 [shape = 'u32[144,128]{1,0:T(1,128)}', space=vmem, size = 0x12000, scoped, tag = 'internal scratch']
  #allocation2 [shape = 'f32[8,128]{1,0:T(8,128)}', space=vmem, size = 0x1000, scoped, tag = 'scratch operand']
  #allocation3 [shape = 'f32[1]{0:T(128)}', space=smem, size = 0x200, scoped, tag = 'scratch operand']
  %s0 = inlined_call_operand.hbm [shape: f32[2,10], index: 0, kind: input, shape index: {}]
  %s1 = inlined_call_operand.hbm [shape: f32[2,10], index: 1, kind: input, shape index: {}]
  %s2 = inlined_call_operand.hbm [shape: f32[16,128], index: 2, kind: input, shape index: {}]
  %s3 = inlined_call_operand.hbm [shape: f32[16,128], index: 3, kind: input, shape index: {}]
  %s4 = inlined_call_operand.hbm [shape: f32[1,1], index: 4, kind: output, shape index: {}]
  %s5 = sld [smem:[#allocation0]]
  $region54: #{tpu_custom_call.1} parent=0
    _
  %s7 = ssub.s32 1, %s5
  %s8 = scalar_select 0, %s7, %s5
  $region1: #{tpu_custom_call.1} parent=0
    #allocation4 [shape = 'u8[1024]{0}', space=vmem, size = 0x400, scoped, tag = 'input window, operand 0, single buffered']
    #allocation5 [shape = 's32[1]{0}', space=sflag, size = 0x4, scoped, tag = 'scoped memory for tpu_custom_call.1']
    #allocation6 [shape = 's32[1]{0}', space=sflag, size = 0x4, scoped, tag = 'scoped memory for tpu_custom_call.1']
    #allocation7 [shape = 'u8[1024]{0}', space=vmem, size = 0x400, scoped, tag = 'input window, operand 1, single buffered']
    #allocation8 [shape = 's32[1]{0}', space=sflag, size = 0x4, scoped, tag = 'scoped memory for tpu_custom_call.1']
    #allocation9 [shape = 'u8[8192]{0}', space=vmem, size = 0x2000, scoped, tag = 'input window, operand 2, single buffered']
    #allocation10 [shape = 'u8[8192]{0}', space=vmem, size = 0x2000, scoped, tag = 'input window, operand 3, single buffered']
    #allocation11 [shape = 's32[1]{0}', space=sflag, size = 0x4, scoped, tag = 'scoped memory for tpu_custom_call.1']
    #allocation12 [shape = 'u8[512]{0}', space=smem, size = 0x200, scoped, tag = 'output window, operand 0, single buffered']
    %9 = vsyncpa [#allocation5], 0
    %10 = vsyncpa [#allocation8], 0
    %11 = vsyncpa [#allocation11], 0
    %12 = vsyncpa [#allocation6], 0
    // Predicated region
    $region2: #{tpu_custom_call.1} parent=1 // pred_check
      _
    $region3: #{tpu_custom_call.1} parent=1 // pred_check_branch
      %14 = sbr.rel (0) target = $region5
    $region4: #{tpu_custom_call.1} parent=1 // pred_region
      %s16 = ssub.s32 32, 32
      %17 = vsyncadd [#allocation5], %s16
      %s19 = sshll.u32 [#allocation4], 4
      %s20 = int_to_ptr.vmem [resolvable:$true] %s19
      %22 = dma.hbm_to_vmem [thread:$0]  %s0, 32, %s20, [#allocation5]
    $region5: #{tpu_custom_call.1} parent=1 // pred_fallthru
      _
    // Predicated region
    $region6: #{tpu_custom_call.1} parent=1 // pred_check
      _
    $region7: #{tpu_custom_call.1} parent=1 // pred_check_branch
      %24 = sbr.rel (0) target = $region9
    $region8: #{tpu_custom_call.1} parent=1 // pred_region
      %s26 = ssub.s32 32, 32
      %27 = vsyncadd [#allocation8], %s26
      %s29 = sshll.u32 [#allocation7], 4
      %s30 = int_to_ptr.vmem [resolvable:$true] %s29
      %32 = dma.hbm_to_vmem [thread:$0]  %s1, 32, %s30, [#allocation8]
    $region9: #{tpu_custom_call.1} parent=1 // pred_fallthru
      _
    // Predicated region
    $region10: #{tpu_custom_call.1} parent=1 // pred_check
      _
    $region11: #{tpu_custom_call.1} parent=1 // pred_check_branch
      %34 = sbr.rel (0) target = $region13
    $region12: #{tpu_custom_call.1} parent=1 // pred_region
      %s35 = sadd.s32 0, 0
      %s36 = smul.u32 2, %s35
      %s38 = ssub.s32 256, 256
      %39 = vsyncadd [#allocation8], %s38
      %s40 = smul.addr %s36, 128
      %s41 = scalar_lea.hbm %s2, %s40
      %s42 = sshll.u32 [#allocation9], 4
      %s43 = int_to_ptr.vmem [resolvable:$true] %s42
      %48 = dma.hbm_to_vmem [thread:$0]  %s41, 256, %s43, [#allocation8], 128, 128, 8
    $region13: #{tpu_custom_call.1} parent=1 // pred_fallthru
      _
    // Predicated region
    $region14: #{tpu_custom_call.1} parent=1 // pred_check
      _
    $region15: #{tpu_custom_call.1} parent=1 // pred_check_branch
      %50 = sbr.rel (0) target = $region17
    $region16: #{tpu_custom_call.1} parent=1 // pred_region
      %s51 = sadd.s32 0, 0
      %s52 = smul.u32 2, %s51
      %s54 = ssub.s32 256, 256
      %55 = vsyncadd [#allocation11], %s54
      %s56 = smul.addr %s52, 128
      %s57 = scalar_lea.hbm %s3, %s56
      %s58 = sshll.u32 [#allocation10], 4
      %s59 = int_to_ptr.vmem [resolvable:$true] %s58
      %64 = dma.hbm_to_vmem [thread:$0]  %s57, 256, %s59, [#allocation11], 128, 128, 8
    $region17: #{tpu_custom_call.1} parent=1 // pred_fallthru
      _
    // Predicated region
    $region18: #{tpu_custom_call.1} parent=1 // pred_check
      _
    $region19: #{tpu_custom_call.1} parent=1 // pred_check_branch
      %66 = sbr.rel (0) target = $region21
    $region20: #{tpu_custom_call.1} parent=1 // pred_region
      %67 = dma.done [#allocation5], 32
    $region21: #{tpu_custom_call.1} parent=1 // pred_fallthru
      _
    // Predicated region
    $region22: #{tpu_custom_call.1} parent=1 // pred_check
      _
    $region23: #{tpu_custom_call.1} parent=1 // pred_check_branch
      %69 = sbr.rel (0) target = $region25
    $region24: #{tpu_custom_call.1} parent=1 // pred_region
      %70 = dma.done [#allocation8], 32
    $region25: #{tpu_custom_call.1} parent=1 // pred_fallthru
      _
    // Predicated region
    $region26: #{tpu_custom_call.1} parent=1 // pred_check
      _
    $region27: #{tpu_custom_call.1} parent=1 // pred_check_branch
      %72 = sbr.rel (0) target = $region29
    $region28: #{tpu_custom_call.1} parent=1 // pred_region
      %73 = dma.done [#allocation8], 256
    $region29: #{tpu_custom_call.1} parent=1 // pred_fallthru
      _
    // Predicated region
    $region30: #{tpu_custom_call.1} parent=1 // pred_check
      _
    $region31: #{tpu_custom_call.1} parent=1 // pred_check_branch
      %75 = sbr.rel (0) target = $region33
    $region32: #{tpu_custom_call.1} parent=1 // pred_region
      %76 = dma.done [#allocation11], 256
    $region33: #{tpu_custom_call.1} parent=1 // pred_fallthru
      _
    %s77 = sadd.s32 0, 0
    %s78 = smul.u32 2, %s77
    %s79 = sadd.s32 0, 0
    %s80 = smul.u32 2, %s79
    %p81 = scmp.eq.s32.totalorder 0, 0
    // Predicated region
    $region34: #{tpu_custom_call.1} parent=1 // pred_check
      %p82 = pneg %p81
    $region35: #{tpu_custom_call.1} parent=1 // pred_check_branch
      %84 = sbr.rel (%p82) target = $region37
    $region36: #{tpu_custom_call.1} parent=1 // pred_region
      %85 = vst [vmem:[#allocation2] sm:$0xff] 0.0
      %s86 = scalar_lea.smem [#allocation3], 0
      %87 = sst [smem:[%s86]] 0.0
    $region37: #{tpu_custom_call.1} parent=1 // pred_fallthru
      _
    %p88 = scmp.eq.s32.totalorder 0, 0
    %p89 = pnand %p81, %p88
    %p90 = pneg %p89
    // Predicated region
    $region38: #{tpu_custom_call.1} parent=1 // pred_check
      _
    $region39: #{tpu_custom_call.1} parent=1 // pred_check_branch
      %92 = sbr.rel (%p89) target = $region41
    $region40: #{tpu_custom_call.1} parent=1 // pred_region
      %v93 = vld [vmem:[#allocation7] sm:$0x3]
      %v94 = vld [vmem:[#allocation4] sm:$0x3]
      %v95 = vsub.f32 0.9, %v93
      %v96 = vmax.f32 %v95, 0.0
      %v97 = vmul.f32 %v96, %v96
      %v98 = vsub.f32 %v93, 0.1
      %v99 = vmax.f32 %v98, 0.0
      %v100 = vmul.f32 %v99, %v99
      %v101 = vmul.f32 %v94, %v97
      %v102 = vsub.f32 1.0, %v94
      %v103 = vmul.f32 %v102, 0.5
      %v104 = vmul.f32 %v103, %v100
      %v105 = vadd.f32 %v101, %v104
      %vm106 = vcmask 74752
      %v107 = vsel %vm106, %v105, 0.0
      %108 = vadd.xlane.f32.xlu0 %v107
      %v109 = vpop.xlane.xlu0 %108
      %v110 = vrot.slane %v109, 4
      %v111 = vadd.f32 %v109, %v110
      %v112 = vrot.slane %v111, 2
      %v113 = vadd.f32 %v111, %v112
      %v114 = vrot.slane %v113, 1
      %v115 = vadd.f32 %v113, %v114
      %s116 = vtos %v115
      %s117 = scalar_lea.smem [#allocation3], 0
      %118 = sst [smem:[%s117]] %s116
    $region41: #{tpu_custom_call.1} parent=1 // pred_fallthru
      _
    %v119 = vld [vmem:[#allocation10] sm:$0xff]
    %v120 = vld [vmem:[#allocation10 + $0x8] sm:$0xff]
    %v121 = vld [vmem:[#allocation9] sm:$0xff]
    %v122 = vld [vmem:[#allocation9 + $0x8] sm:$0xff]
    %v123 = vsub.f32 %v119, %v121
    %v124 = vsub.f32 %v120, %v122
    %v125 = vmul.f32 %v123, %v123
    %v126 = vmul.f32 %v124, %v124
    %v127 = vld [vmem:[#allocation2] sm:$0xff]
    %v128 = vadd.f32 %v125, %v126
    %v129 = vadd.f32 %v127, %v128
    %130 = vst [vmem:[#allocation2] sm:$0xff] %v129
    // Predicated region
    $region42: #{tpu_custom_call.1} parent=1 // pred_check
      %p131 = pneg %p81
    $region43: #{tpu_custom_call.1} parent=1 // pred_check_branch
      %133 = sbr.rel (%p131) target = $region45
    $region44: #{tpu_custom_call.1} parent=1 // pred_region
      %v134 = vld [vmem:[#allocation2] sm:$0xff]
      %135 = vadd.xlane.f32.xlu0 %v134
      %v136 = vpop.xlane.xlu0 %135
      %v137 = vrot.slane %v136, 4
      %v138 = vadd.f32 %v136, %v137
      %v139 = vrot.slane %v138, 2
      %v140 = vadd.f32 %v138, %v139
      %v141 = vrot.slane %v140, 1
      %v142 = vadd.f32 %v140, %v141
      %s143 = vtos %v142
      %s144 = sld [smem:[#allocation3]]
      %s145 = smul.f32 %s143, 0.0005
      %s146 = sadd.f32 %s144, %s145
      %v147 = vrcp.pop 2.0
      %s148 = vtos %v147
      %s149 = smul.f32 %s146, %s148
      %s150 = scalar_lea.smem [#allocation12], 0
      %151 = sst [smem:[%s150]] %s149
    $region45: #{tpu_custom_call.1} parent=1 // pred_fallthru
      _
    // Predicated region
    $region46: #{tpu_custom_call.1} parent=1 // pred_check
      _
    $region47: #{tpu_custom_call.1} parent=1 // pred_check_branch
      %153 = sbr.rel (0) target = $region49
    $region48: #{tpu_custom_call.1} parent=1 // pred_region
      %s155 = ssub.s32 16, 16
      %156 = vsyncadd [#allocation6], %s155
      %159 = dma.smem_to_hbm [#allocation12], 16, %s4, [#allocation6]
    $region49: #{tpu_custom_call.1} parent=1 // pred_fallthru
      _
    // Predicated region
    $region50: #{tpu_custom_call.1} parent=1 // pred_check
      _
    $region51: #{tpu_custom_call.1} parent=1 // pred_check_branch
      %161 = sbr.rel (0) target = $region53
    $region52: #{tpu_custom_call.1} parent=1 // pred_region
      %162 = dma.done [#allocation6], 16
    $region53: #{tpu_custom_call.1} parent=1 // pred_fallthru
      _
    %163 = sfence
    %164 = vsyncpa [#allocation5], 1
    %165 = vsyncpa [#allocation8], 1
    %166 = vsyncpa [#allocation11], 1
    %167 = vsyncpa [#allocation6], 1

</llo_original>
